<compile_context>
chip_gen: v7x
topology: tpu7x:2x2x1
jax: 0.10.0
libtpu: 0.0.40
codegen_flags: <defaults>
</compile_context>

<pallas_src>
from functools import partial

import jax
import jax.numpy as jnp
from jax.experimental import pallas as pl
from jax.experimental.pallas import tpu as pltpu

# ---------------- problem sizes (from the module) ----------------
RAW_TEXT = ('The mathematician ran .\n\nThe mathematician ran to the store .\n\n'
            'The physicist ran to the store .\n\nThe philosopher thought about it .\n\n'
            'The mathematician solved the open problem .').split()
VOCAB = sorted(set(RAW_TEXT))          # deterministic ordering
VOCAB_SIZE = len(VOCAB)                # 15
EMBEDDING_DIM = 32
CONTEXT_SIZE = 4                       # CBOW context window (2 left + 2 right)

VOCAB_PADDED = ((VOCAB_SIZE + 127) // 128) * 128   # lane-dense vocab (128)
B_TILE_MAX = 256                                   # rows per grid step for large batches


def _round_up(x, m):
    return ((x + m - 1) // m) * m


def _cbow_kernel(idx_ref, table_ref, bias_ref, out_ref):
    """One MXU matmul: counts @ (emb @ W^T), plus bias and log-softmax.

    idx_ref   : VMEM i32 (B_TILE, CONTEXT_SIZE)
    table_ref : VMEM f32 (VP, VP)   precomputed emb_p @ w_p.T   (resident)
    bias_ref  : VMEM f32 (1, VP)    vocab-padded bias           (resident)
    out_ref   : VMEM f32 (B_TILE, VP)
    """
    bt, vp = out_ref.shape

    # counts[b, v] = #times vocab id v appears in context b (int accumulate, cast once).
    iota_v = jax.lax.broadcasted_iota(jnp.int32, (1, vp), 1)      # hoisted, reused
    counts_i = jnp.zeros((bt, vp), jnp.int32)
    for j in range(CONTEXT_SIZE):                                 # small static unroll
        counts_i = counts_i + (iota_v == idx_ref[:, j:j + 1]).astype(jnp.int32)
    counts = counts_i.astype(jnp.float32)

    # logits[b] = sum_j emb[idx[b, j]] @ W^T + b  ==  counts[b] @ table + bias
    logits = jnp.dot(counts, table_ref[...],
                     preferred_element_type=jnp.float32) + bias_ref[...]

    # Mask padded vocab lanes with a large-but-finite value so log_softmax stays exact/NaN-free.
    valid = iota_v < VOCAB_SIZE                                    # (1, VP), broadcasts
    logits = jnp.where(valid, logits, jnp.finfo(jnp.float32).min)

    # stable log_softmax along the (lane-dense) vocab axis
    m = jnp.max(logits, axis=1, keepdims=True)
    shifted = logits - m
    lse = jnp.log(jnp.sum(jnp.exp(shifted), axis=1, keepdims=True))  # padded lanes contribute 0
    out_ref[...] = shifted - lse


def prepare_params(emb_table, lin_weight, lin_bias):
    """One-time (outside the hot path) padding + fold of the two matmuls into one table.

    Returns:
      table : (VP, VP) f32, table[v_in, v_out] = emb[v_in] . W[v_out]
      bias  : (1, VP)  f32, zero-padded linear bias
    """
    V, D = emb_table.shape
    emb_p = jnp.zeros((VOCAB_PADDED, D), jnp.float32).at[:V].set(emb_table)
    w_p = jnp.zeros((VOCAB_PADDED, D), jnp.float32).at[:V].set(lin_weight)
    table = emb_p @ w_p.T                                           # (VP, VP) = (128, 128)
    bias_p = jnp.zeros((1, VOCAB_PADDED), jnp.float32).at[0, :V].set(lin_bias)
    return table, bias_p


@partial(jax.jit, static_argnames=("b_tile",))
def _cbow_forward_padded(idx_padded, table, bias, *, b_tile):
    """idx_padded: (Bp, CONTEXT_SIZE) i32 with Bp % b_tile == 0."""
    Bp = idx_padded.shape[0]
    VP = table.shape[0]
    return pl.pallas_call(
        _cbow_kernel,
        out_shape=jax.ShapeDtypeStruct((Bp, VP), jnp.float32),
        grid=(Bp // b_tile,),
        in_specs=[
            pl.BlockSpec((b_tile, CONTEXT_SIZE), lambda i: (i, 0)),  # indices tile
            pl.BlockSpec((VP, VP), lambda i: (0, 0)),                # folded table (resident)
            pl.BlockSpec((1, VP), lambda i: (0, 0)),                 # bias (resident)
        ],
        out_specs=pl.BlockSpec((b_tile, VP), lambda i: (i, 0)),
        compiler_params=pltpu.CompilerParams(
            dimension_semantics=("parallel",)),                      # 2 TCs on v7x
    )(idx_padded, table, bias)


def cbow_forward(indices, table, bias):
    """indices: (CONTEXT_SIZE,) or (B, CONTEXT_SIZE) int; returns (B, V) log-probs
    (B=1 for a single context, matching the module's (1, V) output)."""
    idx = jnp.atleast_2d(jnp.asarray(indices, jnp.int32))
    B = idx.shape[0]
    # Small batches: ONE grid step with the whole (sublane-padded) batch.
    # Large batches: 256-row tiles to keep MXU rows full while amortizing step overhead.
    b_tile = _round_up(B, 8) if B <= B_TILE_MAX else B_TILE_MAX
    Bp = _round_up(B, b_tile)
    if Bp != B:
        idx = jnp.pad(idx, ((0, Bp - B), (0, 0)))
    out = _cbow_forward_padded(idx, table, bias, b_tile=b_tile)
    return out[:B, :VOCAB_SIZE]


def _reference(idx_b, emb_table, lin_weight, lin_bias):
    idx_b = jnp.atleast_2d(idx_b)
    embeds = emb_table[idx_b]                    # (B, C, D)
    sum_emb = jnp.sum(embeds, axis=1)            # (B, D)
    logits = sum_emb @ lin_weight.T + lin_bias   # (B, V)
    return jax.nn.log_softmax(logits, axis=-1)


if __name__ == "__main__":
    key = jax.random.PRNGKey(0)
    k_emb, k_w, k_b, k_idx = jax.random.split(key, 4)

    # Parameter init mirroring the PyTorch module's shapes:
    #   nn.Embedding(V, D).weight ~ N(0, 1)                -> (V, D)
    #   nn.Linear(D, V).weight ~ U(-1/sqrt(D), 1/sqrt(D))  -> (V, D)
    #   nn.Linear(D, V).bias   ~ U(-1/sqrt(D), 1/sqrt(D))  -> (V,)
    emb_table = jax.random.normal(k_emb, (VOCAB_SIZE, EMBEDDING_DIM), dtype=jnp.float32)
    bound = 1.0 / (EMBEDDING_DIM ** 0.5)
    lin_weight = jax.random.uniform(k_w, (VOCAB_SIZE, EMBEDDING_DIM),
                                    minval=-bound, maxval=bound, dtype=jnp.float32)
    lin_bias = jax.random.uniform(k_b, (VOCAB_SIZE,),
                                  minval=-bound, maxval=bound, dtype=jnp.float32)

    table, bias_p = prepare_params(emb_table, lin_weight, lin_bias)

    # Batched example: 64 contexts of 4 word indices each (deterministic) -> single grid step.
    BATCH = 64
    indices = jax.random.randint(k_idx, (BATCH, CONTEXT_SIZE), 0, VOCAB_SIZE, dtype=jnp.int32)

    log_probs = cbow_forward(indices, table, bias_p)
    log_probs = jax.block_until_ready(log_probs)
    assert log_probs.shape == (BATCH, VOCAB_SIZE)
    ref = _reference(indices, emb_table, lin_weight, lin_bias)
    assert jnp.allclose(log_probs, ref, atol=1e-4, rtol=1e-4), "batched mismatch vs JAX reference"

    # Single-context path (original module signature: (CONTEXT_SIZE,) -> (1, V)).
    single = cbow_forward(indices[0], table, bias_p)
    single = jax.block_until_ready(single)
    assert single.shape == (1, VOCAB_SIZE)
    assert jnp.allclose(single, ref[0:1], atol=1e-4, rtol=1e-4), "single-context mismatch"

    # Multi-tile path (B > B_TILE_MAX -> 256-row tiles, 2 grid steps).
    BATCH_BIG = 300
    k_idx2 = jax.random.fold_in(k_idx, 1)
    indices_big = jax.random.randint(k_idx2, (BATCH_BIG, CONTEXT_SIZE), 0, VOCAB_SIZE,
                                     dtype=jnp.int32)
    out_big = jax.block_until_ready(cbow_forward(indices_big, table, bias_p))
    ref_big = _reference(indices_big, emb_table, lin_weight, lin_bias)
    assert out_big.shape == (BATCH_BIG, VOCAB_SIZE)
    assert jnp.allclose(out_big, ref_big, atol=1e-4, rtol=1e-4), "multi-tile mismatch"

    print("KERNEL_OK")
</pallas_src>

<mosaic_0001>
module attributes {stable_mosaic.version = 11 : i64} {
  func.func @_cbow_kernel(%arg0: i32, %arg1: memref<64x4xi32, #tpu.memory_space<vmem>>, %arg2: memref<128x128xf32, #tpu.memory_space<vmem>>, %arg3: memref<1x128xf32, #tpu.memory_space<vmem>>, %arg4: memref<64x128xf32, #tpu.memory_space<vmem>>) attributes {dimension_semantics = [#tpu.dimension_semantics<parallel>], iteration_bounds = array<i64: 1>, scalar_prefetch = 0 : i64, scratch_operands = 0 : i64, tpu.core_type = #tpu.core_type<tc>, window_params = [{transform_indices = @transform_0, window_bounds = array<i64: 64, 4>}, {pipeline_mode = #tpu.pipeline_mode<synchronous>, transform_indices = @transform_1, window_bounds = array<i64: 128, 128>}, {pipeline_mode = #tpu.pipeline_mode<synchronous>, transform_indices = @transform_2, window_bounds = array<i64: 1, 128>}, {transform_indices = @transform_3, window_bounds = array<i64: 64, 128>}]} {
    %0 = tpu.iota {dimensions = array<i32: 1>} : vector<1x128xi32>
    %c0_i32 = arith.constant 0 : i32
    %1 = vector.broadcast %c0_i32 : i32 to vector<64x128xi32>
    %c0 = arith.constant 0 : index
    %c0_0 = arith.constant 0 : index
    %2 = vector.load %arg1[%c0, %c0_0] : memref<64x4xi32, #tpu.memory_space<vmem>>, vector<64x1xi32>
    %3 = vector.broadcast %0 : vector<1x128xi32> to vector<64x128xi32>
    %4 = vector.broadcast %2 : vector<64x1xi32> to vector<64x128xi32>
    %5 = arith.cmpi eq, %3, %4 : vector<64x128xi32>
    %6 = arith.extui %5 : vector<64x128xi1> to vector<64x128xi32>
    %7 = arith.addi %1, %6 : vector<64x128xi32>
    %c0_1 = arith.constant 0 : index
    %c1 = arith.constant 1 : index
    %8 = vector.load %arg1[%c0_1, %c1] : memref<64x4xi32, #tpu.memory_space<vmem>>, vector<64x1xi32>
    %9 = vector.broadcast %0 : vector<1x128xi32> to vector<64x128xi32>
    %10 = vector.broadcast %8 : vector<64x1xi32> to vector<64x128xi32>
    %11 = arith.cmpi eq, %9, %10 : vector<64x128xi32>
    %12 = arith.extui %11 : vector<64x128xi1> to vector<64x128xi32>
    %13 = arith.addi %7, %12 : vector<64x128xi32>
    %c0_2 = arith.constant 0 : index
    %c2 = arith.constant 2 : index
    %14 = vector.load %arg1[%c0_2, %c2] : memref<64x4xi32, #tpu.memory_space<vmem>>, vector<64x1xi32>
    %15 = vector.broadcast %0 : vector<1x128xi32> to vector<64x128xi32>
    %16 = vector.broadcast %14 : vector<64x1xi32> to vector<64x128xi32>
    %17 = arith.cmpi eq, %15, %16 : vector<64x128xi32>
    %18 = arith.extui %17 : vector<64x128xi1> to vector<64x128xi32>
    %19 = arith.addi %13, %18 : vector<64x128xi32>
    %c0_3 = arith.constant 0 : index
    %c3 = arith.constant 3 : index
    %20 = vector.load %arg1[%c0_3, %c3] : memref<64x4xi32, #tpu.memory_space<vmem>>, vector<64x1xi32>
    %21 = vector.broadcast %0 : vector<1x128xi32> to vector<64x128xi32>
    %22 = vector.broadcast %20 : vector<64x1xi32> to vector<64x128xi32>
    %23 = arith.cmpi eq, %21, %22 : vector<64x128xi32>
    %24 = arith.extui %23 : vector<64x128xi1> to vector<64x128xi32>
    %25 = arith.addi %19, %24 : vector<64x128xi32>
    %26 = arith.sitofp %25 : vector<64x128xi32> to vector<64x128xf32>
    %c0_4 = arith.constant 0 : index
    %c0_5 = arith.constant 0 : index
    %27 = vector.load %arg2[%c0_4, %c0_5] : memref<128x128xf32, #tpu.memory_space<vmem>>, vector<128x128xf32>
    %cst = arith.constant dense<0.000000e+00> : vector<64x128xf32>
    %28 = tpu.matmul %26, %27, %cst {dimension_numbers = #tpu.dot_dimension_numbers<[1], [0], [0], [1], [0, 0, 1, 1], [], []>} : vector<64x128xf32>, vector<128x128xf32>, vector<64x128xf32> -> vector<64x128xf32>
    %c0_6 = arith.constant 0 : index
    %c0_7 = arith.constant 0 : index
    %29 = vector.load %arg3[%c0_6, %c0_7] : memref<1x128xf32, #tpu.memory_space<vmem>>, vector<1x128xf32>
    %30 = vector.broadcast %29 : vector<1x128xf32> to vector<64x128xf32>
    %31 = arith.addf %28, %30 : vector<64x128xf32>
    %c15_i32 = arith.constant 15 : i32
    %32 = vector.broadcast %c15_i32 : i32 to vector<1x128xi32>
    %33 = arith.cmpi slt, %0, %32 : vector<1x128xi32>
    %cst_8 = arith.constant -3.40282347E+38 : f32
    %34 = vector.shape_cast %33 : vector<1x128xi1> to vector<1x128xi1>
    %35 = vector.broadcast %34 : vector<1x128xi1> to vector<64x128xi1>
    %36 = vector.broadcast %cst_8 : f32 to vector<64x128xf32>
    %37 = arith.select %35, %31, %36 : vector<64x128xi1>, vector<64x128xf32>
    %cst_9 = arith.constant dense<0xFF800000> : vector<64xf32>
    %38 = vector.multi_reduction <maximumf>, %37, %cst_9 [1] : vector<64x128xf32> to vector<64xf32>
    %39 = vector.shape_cast %38 : vector<64xf32> to vector<64x1xf32>
    %40 = vector.broadcast %39 : vector<64x1xf32> to vector<64x128xf32>
    %41 = arith.subf %37, %40 : vector<64x128xf32>
    %42 = math.exp %41 : vector<64x128xf32>
    %cst_10 = arith.constant dense<0.000000e+00> : vector<64xf32>
    %43 = vector.multi_reduction <add>, %42, %cst_10 [1] : vector<64x128xf32> to vector<64xf32>
    %44 = vector.shape_cast %43 : vector<64xf32> to vector<64x1xf32>
    %45 = math.log %44 : vector<64x1xf32>
    %46 = vector.broadcast %45 : vector<64x1xf32> to vector<64x128xf32>
    %47 = arith.subf %41, %46 : vector<64x128xf32>
    %c0_11 = arith.constant 0 : index
    %c0_12 = arith.constant 0 : index
    %48 = vector.load %arg4[%c0_11, %c0_12] : memref<64x128xf32, #tpu.memory_space<vmem>>, vector<64x128xf32>
    tpu.vector_store %arg4[%c0_11, %c0_12], %47 {strides = array<i32>} : memref<64x128xf32, #tpu.memory_space<vmem>>, vector<64x128xf32>,
    return
  }
  func.func @transform_0(%arg0: i32) -> (i32, i32) {
    %c0_i32 = arith.constant 0 : i32
    %c0_i32_0 = arith.constant 0 : i32
    return %arg0, %c0_i32 : i32, i32
  }
  func.func @transform_1(%arg0: i32) -> (i32, i32) {
    %c0_i32 = arith.constant 0 : i32
    %c0_i32_0 = arith.constant 0 : i32
    %c0_i32_1 = arith.constant 0 : i32
    return %c0_i32, %c0_i32_0 : i32, i32
  }
  func.func @transform_2(%arg0: i32) -> (i32, i32) {
    %c0_i32 = arith.constant 0 : i32
    %c0_i32_0 = arith.constant 0 : i32
    %c0_i32_1 = arith.constant 0 : i32
    return %c0_i32, %c0_i32_0 : i32, i32
  }
  func.func @transform_3(%arg0: i32) -> (i32, i32) {
    %c0_i32 = arith.constant 0 : i32
    %c0_i32_0 = arith.constant 0 : i32
    return %arg0, %c0_i32 : i32, i32
  }
}

</mosaic_0001>

<llo_original>
// kernel: _cbow_forward_padded.1
$region0: #{_cbow_forward_padded.1}
  #allocation0 [shape = 'u32[]', space=smem, size = 0x4, offset = 0x4, fixed_abs, tag = 'smem constant byte address 0x4 - core index']
  #allocation1 [shape = 'u32[144,128]{1,0:T(1,128)}', space=vmem, size = 0x12000, scoped, tag = 'internal scratch']
  %s0 = inlined_call_operand.vmem [shape: s32[64,4], index: 0, kind: input, shape index: {}]
  %s1 = inlined_call_operand.hbm [shape: f32[128,128], index: 1, kind: input, shape index: {}]
  %s2 = inlined_call_operand.vmem [shape: f32[1,128], index: 2, kind: input, shape index: {}]
  %s3 = inlined_call_operand.hbm [shape: f32[64,128], index: 3, kind: output, shape index: {}]
  %s4 = sld [smem:[#allocation0]]
  $region26: #{_cbow_forward_padded.1} parent=0
    _
  %s6 = ssub.s32 1, %s4
  %s7 = scalar_select 0, %s6, %s4
  $region1: #{_cbow_forward_padded.1} parent=0
    #allocation2 [shape = 'u8[65536]{0}', space=vmem, size = 0x10000, scoped, tag = 'input window, operand 1, single buffered']
    #allocation3 [shape = 's32[1]{0}', space=sflag, size = 0x4, scoped, tag = 'scoped memory for _cbow_forward_padded.1']
    #allocation4 [shape = 's32[1]{0}', space=sflag, size = 0x4, scoped, tag = 'scoped memory for _cbow_forward_padded.1']
    #allocation5 [shape = 'u8[32768]{0}', space=vmem, size = 0x8000, scoped, tag = 'output window, operand 0, single buffered']
    %8 = vsyncpa [#allocation3], 0
    %9 = vsyncpa [#allocation4], 0
    // Predicated region
    $region2: #{_cbow_forward_padded.1} parent=1 // pred_check
      _
    $region3: #{_cbow_forward_padded.1} parent=1 // pred_check_branch
      %11 = sbr.rel (0) target = $region5
    $region4: #{_cbow_forward_padded.1} parent=1 // pred_region
      _
    $region5: #{_cbow_forward_padded.1} parent=1 // pred_fallthru
      _
    // Predicated region
    $region6: #{_cbow_forward_padded.1} parent=1 // pred_check
      _
    $region7: #{_cbow_forward_padded.1} parent=1 // pred_check_branch
      %13 = sbr.rel (0) target = $region9
    $region8: #{_cbow_forward_padded.1} parent=1 // pred_region
      %s15 = ssub.s32 2048, 2048
      %16 = vsyncadd [#allocation3], %s15
      %s17 = sshll.u32 [#allocation2], 4
      %s18 = int_to_ptr.vmem [resolvable:$true] %s17
      %23 = dma.hbm_to_vmem [thread:$0]  %s1, 2048, %s18, [#allocation3], 128, 128, 8
    $region9: #{_cbow_forward_padded.1} parent=1 // pred_fallthru
      _
    // Predicated region
    $region10: #{_cbow_forward_padded.1} parent=1 // pred_check
      _
    $region11: #{_cbow_forward_padded.1} parent=1 // pred_check_branch
      %25 = sbr.rel (0) target = $region13
    $region12: #{_cbow_forward_padded.1} parent=1 // pred_region
      _
    $region13: #{_cbow_forward_padded.1} parent=1 // pred_fallthru
      _
    // Predicated region
    $region14: #{_cbow_forward_padded.1} parent=1 // pred_check
      _
    $region15: #{_cbow_forward_padded.1} parent=1 // pred_check_branch
      %27 = sbr.rel (0) target = $region17
    $region16: #{_cbow_forward_padded.1} parent=1 // pred_region
      %28 = dma.done [#allocation3], 2048
    $region17: #{_cbow_forward_padded.1} parent=1 // pred_fallthru
      _
    %v29 = vlaneseq
    %v30 = vand.u32 %v29, 127
    %v31 = vld [vmem:[%s0] sm:$0xff]
    %v32 = vld [vmem:[%s0 + $0x8] sm:$0xff]
    %v33 = vld [vmem:[%s0 + $0x10] sm:$0xff]
    %v34 = vld [vmem:[%s0 + $0x18] sm:$0xff]
    %v35 = vld [vmem:[%s0 + $0x20] sm:$0xff]
    %v36 = vld [vmem:[%s0 + $0x28] sm:$0xff]
    %v37 = vld [vmem:[%s0 + $0x30] sm:$0xff]
    %v38 = vld [vmem:[%s0 + $0x38] sm:$0xff]
    %39 = vset.pattern.permute.xlu0 0
    %40 = vperm.xlu0 %39, %v31
    %v41 = vpop.permute.xlu0 %40
    %42 = vset.pattern.permute.xlu0 0
    %43 = vperm.xlu0 %42, %v32
    %v44 = vpop.permute.xlu0 %43
    %45 = vset.pattern.permute.xlu0 0
    %46 = vperm.xlu0 %45, %v33
    %v47 = vpop.permute.xlu0 %46
    %48 = vset.pattern.permute.xlu0 0
    %49 = vperm.xlu0 %48, %v34
    %v50 = vpop.permute.xlu0 %49
    %51 = vset.pattern.permute.xlu0 0
    %52 = vperm.xlu0 %51, %v35
    %v53 = vpop.permute.xlu0 %52
    %54 = vset.pattern.permute.xlu0 0
    %55 = vperm.xlu0 %54, %v36
    %v56 = vpop.permute.xlu0 %55
    %57 = vset.pattern.permute.xlu0 0
    %58 = vperm.xlu0 %57, %v37
    %v59 = vpop.permute.xlu0 %58
    %60 = vset.pattern.permute.xlu0 0
    %61 = vperm.xlu0 %60, %v38
    %v62 = vpop.permute.xlu0 %61
    %vm63 = vcmp.eq.s32.totalorder %v30, %v41
    %vm64 = vcmp.eq.s32.totalorder %v30, %v44
    %vm65 = vcmp.eq.s32.totalorder %v30, %v47
    %vm66 = vcmp.eq.s32.totalorder %v30, %v50
    %vm67 = vcmp.eq.s32.totalorder %v30, %v53
    %vm68 = vcmp.eq.s32.totalorder %v30, %v56
    %vm69 = vcmp.eq.s32.totalorder %v30, %v59
    %vm70 = vcmp.eq.s32.totalorder %v30, %v62
    %v71 = vsel %vm63, 1, 0
    %v72 = vsel %vm64, 1, 0
    %v73 = vsel %vm65, 1, 0
    %v74 = vsel %vm66, 1, 0
    %v75 = vsel %vm67, 1, 0
    %v76 = vsel %vm68, 1, 0
    %v77 = vsel %vm69, 1, 0
    %v78 = vsel %vm70, 1, 0
    %79 = vset.pattern.permute.xlu0 1
    %80 = vperm.xlu0 %79, %v31
    %v81 = vpop.permute.xlu0 %80
    %82 = vset.pattern.permute.xlu0 1
    %83 = vperm.xlu0 %82, %v32
    %v84 = vpop.permute.xlu0 %83
    %85 = vset.pattern.permute.xlu0 1
    %86 = vperm.xlu0 %85, %v33
    %v87 = vpop.permute.xlu0 %86
    %88 = vset.pattern.permute.xlu0 1
    %89 = vperm.xlu0 %88, %v34
    %v90 = vpop.permute.xlu0 %89
    %91 = vset.pattern.permute.xlu0 1
    %92 = vperm.xlu0 %91, %v35
    %v93 = vpop.permute.xlu0 %92
    %94 = vset.pattern.permute.xlu0 1
    %95 = vperm.xlu0 %94, %v36
    %v96 = vpop.permute.xlu0 %95
    %97 = vset.pattern.permute.xlu0 1
    %98 = vperm.xlu0 %97, %v37
    %v99 = vpop.permute.xlu0 %98
    %100 = vset.pattern.permute.xlu0 1
    %101 = vperm.xlu0 %100, %v38
    %v102 = vpop.permute.xlu0 %101
    %vm103 = vcmp.eq.s32.totalorder %v30, %v81
    %vm104 = vcmp.eq.s32.totalorder %v30, %v84
    %vm105 = vcmp.eq.s32.totalorder %v30, %v87
    %vm106 = vcmp.eq.s32.totalorder %v30, %v90
    %vm107 = vcmp.eq.s32.totalorder %v30, %v93
    %vm108 = vcmp.eq.s32.totalorder %v30, %v96
    %vm109 = vcmp.eq.s32.totalorder %v30, %v99
    %vm110 = vcmp.eq.s32.totalorder %v30, %v102
    %v111 = vsel %vm103, 1, 0
    %v112 = vsel %vm104, 1, 0
    %v113 = vsel %vm105, 1, 0
    %v114 = vsel %vm106, 1, 0
    %v115 = vsel %vm107, 1, 0
    %v116 = vsel %vm108, 1, 0
    %v117 = vsel %vm109, 1, 0
    %v118 = vsel %vm110, 1, 0
    %v119 = vadd.s32 %v71, %v111
    %v120 = vadd.s32 %v72, %v112
    %v121 = vadd.s32 %v73, %v113
    %v122 = vadd.s32 %v74, %v114
    %v123 = vadd.s32 %v75, %v115
    %v124 = vadd.s32 %v76, %v116
    %v125 = vadd.s32 %v77, %v117
    %v126 = vadd.s32 %v78, %v118
    %127 = vset.pattern.permute.xlu0 2
    %128 = vperm.xlu0 %127, %v31
    %v129 = vpop.permute.xlu0 %128
    %130 = vset.pattern.permute.xlu0 2
    %131 = vperm.xlu0 %130, %v32
    %v132 = vpop.permute.xlu0 %131
    %133 = vset.pattern.permute.xlu0 2
    %134 = vperm.xlu0 %133, %v33
    %v135 = vpop.permute.xlu0 %134
    %136 = vset.pattern.permute.xlu0 2
    %137 = vperm.xlu0 %136, %v34
    %v138 = vpop.permute.xlu0 %137
    %139 = vset.pattern.permute.xlu0 2
    %140 = vperm.xlu0 %139, %v35
    %v141 = vpop.permute.xlu0 %140
    %142 = vset.pattern.permute.xlu0 2
    %143 = vperm.xlu0 %142, %v36
    %v144 = vpop.permute.xlu0 %143
    %145 = vset.pattern.permute.xlu0 2
    %146 = vperm.xlu0 %145, %v37
    %v147 = vpop.permute.xlu0 %146
    %148 = vset.pattern.permute.xlu0 2
    %149 = vperm.xlu0 %148, %v38
    %v150 = vpop.permute.xlu0 %149
    %vm151 = vcmp.eq.s32.totalorder %v30, %v129
    %vm152 = vcmp.eq.s32.totalorder %v30, %v132
    %vm153 = vcmp.eq.s32.totalorder %v30, %v135
    %vm154 = vcmp.eq.s32.totalorder %v30, %v138
    %vm155 = vcmp.eq.s32.totalorder %v30, %v141
    %vm156 = vcmp.eq.s32.totalorder %v30, %v144
    %vm157 = vcmp.eq.s32.totalorder %v30, %v147
    %vm158 = vcmp.eq.s32.totalorder %v30, %v150
    %v159 = vsel %vm151, 1, 0
    %v160 = vsel %vm152, 1, 0
    %v161 = vsel %vm153, 1, 0
    %v162 = vsel %vm154, 1, 0
    %v163 = vsel %vm155, 1, 0
    %v164 = vsel %vm156, 1, 0
    %v165 = vsel %vm157, 1, 0
    %v166 = vsel %vm158, 1, 0
    %v167 = vadd.s32 %v119, %v159
    %v168 = vadd.s32 %v120, %v160
    %v169 = vadd.s32 %v121, %v161
    %v170 = vadd.s32 %v122, %v162
    %v171 = vadd.s32 %v123, %v163
    %v172 = vadd.s32 %v124, %v164
    %v173 = vadd.s32 %v125, %v165
    %v174 = vadd.s32 %v126, %v166
    %175 = vset.pattern.permute.xlu0 3
    %176 = vperm.xlu0 %175, %v31
    %v177 = vpop.permute.xlu0 %176
    %178 = vset.pattern.permute.xlu0 3
    %179 = vperm.xlu0 %178, %v32
    %v180 = vpop.permute.xlu0 %179
    %181 = vset.pattern.permute.xlu0 3
    %182 = vperm.xlu0 %181, %v33
    %v183 = vpop.permute.xlu0 %182
    %184 = vset.pattern.permute.xlu0 3
    %185 = vperm.xlu0 %184, %v34
    %v186 = vpop.permute.xlu0 %185
    %187 = vset.pattern.permute.xlu0 3
    %188 = vperm.xlu0 %187, %v35
    %v189 = vpop.permute.xlu0 %188
    %190 = vset.pattern.permute.xlu0 3
    %191 = vperm.xlu0 %190, %v36
    %v192 = vpop.permute.xlu0 %191
    %193 = vset.pattern.permute.xlu0 3
    %194 = vperm.xlu0 %193, %v37
    %v195 = vpop.permute.xlu0 %194
    %196 = vset.pattern.permute.xlu0 3
    %197 = vperm.xlu0 %196, %v38
    %v198 = vpop.permute.xlu0 %197
    %vm199 = vcmp.eq.s32.totalorder %v30, %v177
    %vm200 = vcmp.eq.s32.totalorder %v30, %v180
    %vm201 = vcmp.eq.s32.totalorder %v30, %v183
    %vm202 = vcmp.eq.s32.totalorder %v30, %v186
    %vm203 = vcmp.eq.s32.totalorder %v30, %v189
    %vm204 = vcmp.eq.s32.totalorder %v30, %v192
    %vm205 = vcmp.eq.s32.totalorder %v30, %v195
    %vm206 = vcmp.eq.s32.totalorder %v30, %v198
    %v207 = vsel %vm199, 1, 0
    %v208 = vsel %vm200, 1, 0
    %v209 = vsel %vm201, 1, 0
    %v210 = vsel %vm202, 1, 0
    %v211 = vsel %vm203, 1, 0
    %v212 = vsel %vm204, 1, 0
    %v213 = vsel %vm205, 1, 0
    %v214 = vsel %vm206, 1, 0
    %v215 = vadd.s32 %v167, %v207
    %v216 = vadd.s32 %v168, %v208
    %v217 = vadd.s32 %v169, %v209
    %v218 = vadd.s32 %v170, %v210
    %v219 = vadd.s32 %v171, %v211
    %v220 = vadd.s32 %v172, %v212
    %v221 = vadd.s32 %v173, %v213
    %v222 = vadd.s32 %v174, %v214
    %v223 = vcvt.s32.f32 %v215
    %v224 = vcvt.s32.f32 %v216
    %v225 = vcvt.s32.f32 %v217
    %v226 = vcvt.s32.f32 %v218
    %v227 = vcvt.s32.f32 %v219
    %v228 = vcvt.s32.f32 %v220
    %v229 = vcvt.s32.f32 %v221
    %v230 = vcvt.s32.f32 %v222
    %v231 = vld [vmem:[#allocation2] sm:$0xff]
    %v232 = vld [vmem:[#allocation2 + $0x8] sm:$0xff]
    %v233 = vld [vmem:[#allocation2 + $0x10] sm:$0xff]
    %v234 = vld [vmem:[#allocation2 + $0x18] sm:$0xff]
    %v235 = vld [vmem:[#allocation2 + $0x20] sm:$0xff]
    %v236 = vld [vmem:[#allocation2 + $0x28] sm:$0xff]
    %v237 = vld [vmem:[#allocation2 + $0x30] sm:$0xff]
    %v238 = vld [vmem:[#allocation2 + $0x38] sm:$0xff]
    %v239 = vld [vmem:[#allocation2 + $0x40] sm:$0xff]
    %v240 = vld [vmem:[#allocation2 + $0x48] sm:$0xff]
    %v241 = vld [vmem:[#allocation2 + $0x50] sm:$0xff]
    %v242 = vld [vmem:[#allocation2 + $0x58] sm:$0xff]
    %v243 = vld [vmem:[#allocation2 + $0x60] sm:$0xff]
    %v244 = vld [vmem:[#allocation2 + $0x68] sm:$0xff]
    %v245 = vld [vmem:[#allocation2 + $0x70] sm:$0xff]
    %v246 = vld [vmem:[#allocation2 + $0x78] sm:$0xff]
    %v247 = vld [vmem:[%s2] sm:$0x1]
    %v249 = vlaneseq
    %v250 = vshrl.u32 %v249, 7
    %v251 = vsub.s32 0, %v250
    %v252 = vrot.slane %v247, %v251
    %254 = vmatprep.subr.mxu0 0.0
    %255 = vmatpush1.msra.mxu0 %v231
    %256 = vmatprep.subr.mxu0 0.0
    %257 = vmatpush1.msra.mxu0 %v232
    %258 = vmatprep.subr.mxu0 0.0
    %259 = vmatpush1.msra.mxu0 %v233
    %260 = vmatprep.subr.mxu0 0.0
    %261 = vmatpush1.msra.mxu0 %v234
    %262 = vmatprep.subr.mxu0 0.0
    %263 = vmatpush1.msra.mxu0 %v235
    %264 = vmatprep.subr.mxu0 0.0
    %265 = vmatpush1.msra.mxu0 %v236
    %266 = vmatprep.subr.mxu0 0.0
    %267 = vmatpush1.msra.mxu0 %v237
    %268 = vmatprep.subr.mxu0 0.0
    %269 = vmatpush1.msra.mxu0 %v238
    %270 = vmatprep.subr.mxu0 0.0
    %271 = vmatpush1.msra.mxu0 %v239
    %272 = vmatprep.subr.mxu0 0.0
    %273 = vmatpush1.msra.mxu0 %v240
    %274 = vmatprep.subr.mxu0 0.0
    %275 = vmatpush1.msra.mxu0 %v241
    %276 = vmatprep.subr.mxu0 0.0
    %277 = vmatpush1.msra.mxu0 %v242
    %278 = vmatprep.subr.mxu0 0.0
    %279 = vmatpush1.msra.mxu0 %v243
    %280 = vmatprep.subr.mxu0 0.0
    %281 = vmatpush1.msra.mxu0 %v244
    %282 = vmatprep.subr.mxu0 0.0
    %283 = vmatpush1.msra.mxu0 %v245
    %284 = vmatprep.subr.mxu0 0.0
    %285 = vmatpush1.msra.mxu0 %v246
    %286 = vmatprep.subr.mxu0 0.0
    %287 = vmatpush1.msra.mxu0 0.0
    %288 = vmatprep.subr.mxu0 0.0
    %289 = vmatpush1.msra.mxu0 0.0
    %290 = vmatprep.subr.mxu0 0.0
    %291 = vmatpush1.msra.mxu0 0.0
    %292 = vmatprep.subr.mxu0 0.0
    %293 = vmatpush1.msra.mxu0 0.0
    %294 = vmatprep.subr.mxu0 0.0
    %295 = vmatpush1.msra.mxu0 0.0
    %296 = vmatprep.subr.mxu0 0.0
    %297 = vmatpush1.msra.mxu0 0.0
    %298 = vmatprep.subr.mxu0 0.0
    %299 = vmatpush1.msra.mxu0 0.0
    %300 = vmatprep.subr.mxu0 0.0
    %301 = vmatpush1.msra.mxu0 0.0
    %302 = vmatprep.subr.mxu0 0.0
    %303 = vmatpush1.msra.mxu0 0.0
    %304 = vmatprep.subr.mxu0 0.0
    %305 = vmatpush1.msra.mxu0 0.0
    %306 = vmatprep.subr.mxu0 0.0
    %307 = vmatpush1.msra.mxu0 0.0
    %308 = vmatprep.subr.mxu0 0.0
    %309 = vmatpush1.msra.mxu0 0.0
    %310 = vmatprep.subr.mxu0 0.0
    %311 = vmatpush1.msra.mxu0 0.0
    %312 = vmatprep.subr.mxu0 0.0
    %313 = vmatpush1.msra.mxu0 0.0
    %314 = vmatprep.subr.mxu0 0.0
    %315 = vmatpush1.msra.mxu0 0.0
    %316 = vmatprep.subr.mxu0 0.0
    %317 = vmatpush1.msra.mxu0 0.0
    %318 = vmatprep.mubr.f32.mxu0 0.0
    %319 = vmatmul.mubr.f32.gmra.mrb[0].mxu0 %v223
    %v320 = vpop.f32.mrb[0].mxu0
    %v321 = vadd.f32 %v252, %v320
    %v322 = vpop.f32.mrb[0].mxu0
    %323 = vmatprep.mubr.f32.mxu0 0.0
    %324 = vmatmul.mubr.f32.gmra.mrb[0].mxu0 %v224
    %v325 = vpop.f32.mrb[0].mxu0
    %v326 = vadd.f32 %v252, %v325
    %v327 = vpop.f32.mrb[0].mxu0
    %328 = vmatprep.mubr.f32.mxu0 0.0
    %329 = vmatmul.mubr.f32.gmra.mrb[0].mxu0 %v225
    %v330 = vpop.f32.mrb[0].mxu0
    %v331 = vadd.f32 %v252, %v330
    %v332 = vpop.f32.mrb[0].mxu0
    %333 = vmatprep.mubr.f32.mxu0 0.0
    %334 = vmatmul.mubr.f32.gmra.mrb[0].mxu0 %v226
    %v335 = vpop.f32.mrb[0].mxu0
    %v336 = vadd.f32 %v252, %v335
    %v337 = vpop.f32.mrb[0].mxu0
    %338 = vmatprep.mubr.f32.mxu0 0.0
    %339 = vmatmul.mubr.f32.gmra.mrb[0].mxu0 %v227
    %v340 = vpop.f32.mrb[0].mxu0
    %v341 = vadd.f32 %v252, %v340
    %v342 = vpop.f32.mrb[0].mxu0
    %343 = vmatprep.mubr.f32.mxu0 0.0
    %344 = vmatmul.mubr.f32.gmra.mrb[0].mxu0 %v228
    %v345 = vpop.f32.mrb[0].mxu0
    %v346 = vadd.f32 %v252, %v345
    %v347 = vpop.f32.mrb[0].mxu0
    %348 = vmatprep.mubr.f32.mxu0 0.0
    %349 = vmatmul.mubr.f32.gmra.mrb[0].mxu0 %v229
    %v350 = vpop.f32.mrb[0].mxu0
    %v351 = vadd.f32 %v252, %v350
    %v352 = vpop.f32.mrb[0].mxu0
    %353 = vmatprep.mubr.f32.mxu0 0.0
    %354 = vmatmul.mubr.f32.gmra.mrb[0].mxu0 %v230
    %v355 = vpop.f32.mrb[0].mxu0
    %v356 = vadd.f32 %v252, %v355
    %v357 = vpop.f32.mrb[0].mxu0
    %358 = vdwg.mxu0
    %vm359 = vcmp.lt.s32.totalorder %v30, 15
    %v360 = vsel %vm359, 1, 0
    %vm361 = vcmp.eq.s32.totalorder %v360, 1
    %v362 = vsel %vm361, %v321, -3.4028235e+38
    %v363 = vsel %vm361, %v326, -3.4028235e+38
    %v364 = vsel %vm361, %v331, -3.4028235e+38
    %v365 = vsel %vm361, %v336, -3.4028235e+38
    %v366 = vsel %vm361, %v341, -3.4028235e+38
    %v367 = vsel %vm361, %v346, -3.4028235e+38
    %v368 = vsel %vm361, %v351, -3.4028235e+38
    %v369 = vsel %vm361, %v356, -3.4028235e+38
    %370 = vmax.xlane.f32.xlu0 %v362
    %v371 = vpop.xlane.xlu0 %370
    %372 = vmax.xlane.f32.xlu0 %v363
    %v373 = vpop.xlane.xlu0 %372
    %374 = vmax.xlane.f32.xlu0 %v364
    %v375 = vpop.xlane.xlu0 %374
    %376 = vmax.xlane.f32.xlu0 %v365
    %v377 = vpop.xlane.xlu0 %376
    %378 = vmax.xlane.f32.xlu0 %v366
    %v379 = vpop.xlane.xlu0 %378
    %380 = vmax.xlane.f32.xlu0 %v367
    %v381 = vpop.xlane.xlu0 %380
    %382 = vmax.xlane.f32.xlu0 %v368
    %v383 = vpop.xlane.xlu0 %382
    %384 = vmax.xlane.f32.xlu0 %v369
    %v385 = vpop.xlane.xlu0 %384
    %v386 = vsub.f32 %v362, %v371
    %v387 = vsub.f32 %v363, %v373
    %v388 = vsub.f32 %v364, %v375
    %v389 = vsub.f32 %v365, %v377
    %v390 = vsub.f32 %v366, %v379
    %v391 = vsub.f32 %v367, %v381
    %v392 = vsub.f32 %v368, %v383
    %v393 = vsub.f32 %v369, %v385
    %v394 = vmul.f32 %v386, 1.442695
    %v395 = vpow.pop %v394
    %v396 = vmul.f32 %v387, 1.442695
    %v397 = vpow.pop %v396
    %v398 = vmul.f32 %v388, 1.442695
    %v399 = vpow.pop %v398
    %v400 = vmul.f32 %v389, 1.442695
    %v401 = vpow.pop %v400
    %v402 = vmul.f32 %v390, 1.442695
    %v403 = vpow.pop %v402
    %v404 = vmul.f32 %v391, 1.442695
    %v405 = vpow.pop %v404
    %v406 = vmul.f32 %v392, 1.442695
    %v407 = vpow.pop %v406
    %v408 = vmul.f32 %v393, 1.442695
    %v409 = vpow.pop %v408
    %410 = vadd.xlane.f32.xlu0 %v395
    %v411 = vpop.xlane.xlu0 %410
    %412 = vadd.xlane.f32.xlu0 %v397
    %v413 = vpop.xlane.xlu0 %412
    %414 = vadd.xlane.f32.xlu0 %v399
    %v415 = vpop.xlane.xlu0 %414
    %416 = vadd.xlane.f32.xlu0 %v401
    %v417 = vpop.xlane.xlu0 %416
    %418 = vadd.xlane.f32.xlu0 %v403
    %v419 = vpop.xlane.xlu0 %418
    %420 = vadd.xlane.f32.xlu0 %v405
    %v421 = vpop.xlane.xlu0 %420
    %422 = vadd.xlane.f32.xlu0 %v407
    %v423 = vpop.xlane.xlu0 %422
    %424 = vadd.xlane.f32.xlu0 %v409
    %v425 = vpop.xlane.xlu0 %424
    %v426 = vlog2.pop %v411
    %v427 = vmul.f32 %v426, 0.6931472
    %v428 = vlog2.pop %v413
    %v429 = vmul.f32 %v428, 0.6931472
    %v430 = vlog2.pop %v415
    %v431 = vmul.f32 %v430, 0.6931472
    %v432 = vlog2.pop %v417
    %v433 = vmul.f32 %v432, 0.6931472
    %v434 = vlog2.pop %v419
    %v435 = vmul.f32 %v434, 0.6931472
    %v436 = vlog2.pop %v421
    %v437 = vmul.f32 %v436, 0.6931472
    %v438 = vlog2.pop %v423
    %v439 = vmul.f32 %v438, 0.6931472
    %v440 = vlog2.pop %v425
    %v441 = vmul.f32 %v440, 0.6931472
    %v442 = vsub.f32 %v386, %v427
    %v443 = vsub.f32 %v387, %v429
    %v444 = vsub.f32 %v388, %v431
    %v445 = vsub.f32 %v389, %v433
    %v446 = vsub.f32 %v390, %v435
    %v447 = vsub.f32 %v391, %v437
    %v448 = vsub.f32 %v392, %v439
    %v449 = vsub.f32 %v393, %v441
    %450 = vst [vmem:[#allocation5] sm:$0xff] %v442
    %451 = vst [vmem:[#allocation5 + $0x8] sm:$0xff] %v443
    %452 = vst [vmem:[#allocation5 + $0x10] sm:$0xff] %v444
    %453 = vst [vmem:[#allocation5 + $0x18] sm:$0xff] %v445
    %454 = vst [vmem:[#allocation5 + $0x20] sm:$0xff] %v446
    %455 = vst [vmem:[#allocation5 + $0x28] sm:$0xff] %v447
    %456 = vst [vmem:[#allocation5 + $0x30] sm:$0xff] %v448
    %457 = vst [vmem:[#allocation5 + $0x38] sm:$0xff] %v449
    // Predicated region
    $region18: #{_cbow_forward_padded.1} parent=1 // pred_check
      _
    $region19: #{_cbow_forward_padded.1} parent=1 // pred_check_branch
      %459 = sbr.rel (0) target = $region21
    $region20: #{_cbow_forward_padded.1} parent=1 // pred_region
      %s461 = ssub.s32 1024, 1024
      %462 = vsyncadd [#allocation4], %s461
      %s463 = sshll.u32 [#allocation5], 4
      %s464 = int_to_ptr.vmem [resolvable:$true] %s463
      %469 = dma.vmem_to_hbm [thread:$0]  %s464, 1024, %s3, [#allocation4], 128, 128, 8
    $region21: #{_cbow_forward_padded.1} parent=1 // pred_fallthru
      _
    // Predicated region
    $region22: #{_cbow_forward_padded.1} parent=1 // pred_check
      _
    $region23: #{_cbow_forward_padded.1} parent=1 // pred_check_branch
      %471 = sbr.rel (0) target = $region25
    $region24: #{_cbow_forward_padded.1} parent=1 // pred_region
      %472 = dma.done [#allocation4], 1024
    $region25: #{_cbow_forward_padded.1} parent=1 // pred_fallthru
      _
    %473 = vsyncpa [#allocation3], 1
    %474 = vsyncpa [#allocation4], 1

</llo_original>
